<compile_context>
chip_gen: v7x
topology: tpu7x:2x2x1
jax: 0.10.0
libtpu: 0.0.40
codegen_flags: <defaults>
</compile_context>

<pallas_src>
import functools

import jax
import jax.numpy as jnp
from jax.experimental import pallas as pl
from jax.experimental.pallas import tpu as pltpu

_LANE_WIDTHS = (1024, 512, 256, 128)      # lane-dense last dims to try
_MIN_ROWS = 32                            # below 32x128 elems: jnp fallback
_TARGET_BLOCK_BYTES = 4 * 1024 * 1024     # ~4 MiB per input block
_VMEM_LIMIT = 48 * 1024 * 1024


# ----------------------------- kernel bodies ------------------------------ #

def _loss_f32(yp, yt):
    # 1/(1+exp(z)) = sigmoid(-z) = 0.5 - 0.5*tanh(z/2): one EUP op per element,
    # numerically safe for large |z|.  Casts happen in-kernel so HBM traffic
    # stays in the native (possibly bf16) input dtype.
    z = yt.astype(jnp.float32) * yp.astype(jnp.float32)
    return 0.5 - 0.5 * jnp.tanh(0.5 * z)


def _elementwise_kernel(yp_ref, yt_ref, o_ref):
    o_ref[...] = _loss_f32(yp_ref[...], yt_ref[...]).astype(o_ref.dtype)


def _partial_sum_kernel(yp_ref, yt_ref, o_ref, *, rows, block_rows, lane_w,
                        needs_mask):
    loss = _loss_f32(yp_ref[...], yt_ref[...])
    if needs_mask:
        # Last grid block hangs past the end of the (rows, lane_w) array:
        # zero the out-of-bounds rows before they enter the sum.
        row_idx = jax.lax.broadcasted_iota(jnp.int32, (block_rows, lane_w), 0)
        valid = (pl.program_id(0) * block_rows + row_idx) < rows
        loss = jnp.where(valid, loss, 0.0)
    # Per-block (8, lane_w) partial: summing whole (8, lane_w) slabs is pure
    # vreg-wise VPU adds (no XLU), and the output block is (8,128)-aligned so
    # the stores are unmasked full-lane vst.
    o_ref[...] = loss.reshape(block_rows // 8, 8, lane_w).sum(axis=0)


# ------------------------------- wrapper ----------------------------------- #

def _pick_tiling(n, itemsize):
    """Return (lane_w, rows, block_rows) or None for tiny inputs."""
    for lane_w in _LANE_WIDTHS:
        rows = n // lane_w
        if rows >= _MIN_ROWS:
            target_rows = max(32, _TARGET_BLOCK_BYTES // (lane_w * itemsize))
            block_rows = min((rows // 32) * 32, (target_rows // 32) * 32)
            return lane_w, rows, block_rows
    return None


def sigmoid_loss(y_pred, y_true, reduction="none"):
    """Pallas implementation of SigmoidLoss.forward.

    y_pred, y_true: arrays of identical total size (any shape).
    Returns the flattened loss (reduction='none') or a scalar ('mean'/'sum').
    """
    out_dtype = jnp.promote_types(y_pred.dtype, y_true.dtype)
    yp = jnp.ravel(y_pred)       # pure reshape, no extra HBM pass
    yt = jnp.ravel(y_true)
    n = yp.shape[0]

    itemsize = max(jnp.dtype(y_pred.dtype).itemsize,
                   jnp.dtype(y_true.dtype).itemsize,
                   jnp.dtype(out_dtype).itemsize)
    tiling = _pick_tiling(n, itemsize)

    if tiling is None:
        # Smaller than one clean TPU tile: not worth a kernel launch.
        loss = _loss_f32(yp, yt)
        if reduction == "mean":
            return jnp.mean(loss).astype(out_dtype)
        if reduction == "sum":
            return jnp.sum(loss).astype(out_dtype)
        return loss.astype(out_dtype)

    lane_w, rows, block_rows = tiling
    n_bulk = rows * lane_w
    has_tail = n_bulk < n                      # tail < lane_w elements
    num_blocks = (rows + block_rows - 1) // block_rows

    if has_tail:
        # TODO(synk): prefix slice may materialize one copy before the
        # pallas_call; consider CompilerParams(allow_input_fusion=...) once
        # verified on the target jaxlib.  The tail itself is < lane_w elems.
        yp_bulk = yp[:n_bulk].reshape(rows, lane_w)
        yt_bulk = yt[:n_bulk].reshape(rows, lane_w)
    else:
        yp_bulk = yp.reshape(rows, lane_w)     # free layout bitcast
        yt_bulk = yt.reshape(rows, lane_w)

    in_blk = pl.BlockSpec((block_rows, lane_w), lambda i: (i, 0))
    cparams = pltpu.CompilerParams(
        dimension_semantics=("parallel",),      # shard grid across TCs (v7x)
        vmem_limit_bytes=_VMEM_LIMIT,
    )

    if reduction in ("mean", "sum"):
        kernel = functools.partial(
            _partial_sum_kernel,
            rows=rows, block_rows=block_rows, lane_w=lane_w,
            needs_mask=(rows % block_rows != 0))
        partials = pl.pallas_call(
            kernel,
            out_shape=jax.ShapeDtypeStruct((num_blocks * 8, lane_w),
                                           jnp.float32),
            grid_spec=pltpu.PrefetchScalarGridSpec(
                num_scalar_prefetch=0,
                grid=(num_blocks,),
                in_specs=[in_blk, in_blk],
                out_specs=pl.BlockSpec((8, lane_w), lambda i: (i, 0)),
            ),
            compiler_params=cparams,
        )(yp_bulk, yt_bulk)
        total = jnp.sum(partials)               # tiny final cross-lane reduce
        if has_tail:
            total = total + jnp.sum(_loss_f32(yp[n_bulk:], yt[n_bulk:]))
        if reduction == "mean":
            total = total / n
        return total.astype(out_dtype)

    # reduction == 'none'
    out_bulk = pl.pallas_call(
        _elementwise_kernel,
        out_shape=jax.ShapeDtypeStruct((rows, lane_w), out_dtype),
        grid_spec=pltpu.PrefetchScalarGridSpec(
            num_scalar_prefetch=0,
            grid=(num_blocks,),
            in_specs=[in_blk, in_blk],
            out_specs=in_blk,                   # partial edge writes are masked
        ),
        compiler_params=cparams,
    )(yp_bulk, yt_bulk)

    out = out_bulk.reshape(-1)
    if has_tail:
        tail = _loss_f32(yp[n_bulk:], yt[n_bulk:]).astype(out_dtype)
        out = jnp.concatenate([out, tail])
    return out


# -------------------------------- demo ------------------------------------- #

if __name__ == "__main__":
    key = jax.random.PRNGKey(0)
    k1, k2, k3, k4 = jax.random.split(key, 4)

    # Aligned case: (2, 4, 32, 32) = 8192 elements -> (32, 256) tile.
    shape = (2, 4, 32, 32)
    y_pred = jax.random.normal(k1, shape, dtype=jnp.float32)
    y_true = jnp.sign(jax.random.normal(k2, shape, dtype=jnp.float32))
    ref = 1.0 / (1.0 + jnp.exp(jnp.ravel(y_true) * jnp.ravel(y_pred)))

    loss = jax.block_until_ready(sigmoid_loss(y_pred, y_true, "none"))
    assert loss.shape == ref.shape
    assert loss.dtype == ref.dtype
    assert jnp.allclose(loss, ref, rtol=2e-3, atol=2e-3)

    loss_sum = jax.block_until_ready(sigmoid_loss(y_pred, y_true, "sum"))
    loss_mean = jax.block_until_ready(sigmoid_loss(y_pred, y_true, "mean"))
    assert jnp.allclose(loss_sum, jnp.sum(ref), rtol=2e-3)
    assert jnp.allclose(loss_mean, jnp.mean(ref), rtol=2e-3, atol=2e-3)

    # Ragged case: (5, 1237) = 6185 elements -> (48, 128) bulk, grid=2 with a
    # masked partial edge block, plus a 41-element jnp tail.
    yp2 = jax.random.normal(k3, (5, 1237), dtype=jnp.float32)
    yt2 = jnp.sign(jax.random.normal(k4, (5, 1237), dtype=jnp.float32))
    ref2 = 1.0 / (1.0 + jnp.exp(jnp.ravel(yt2) * jnp.ravel(yp2)))
    loss2 = jax.block_until_ready(sigmoid_loss(yp2, yt2, "none"))
    assert loss2.shape == ref2.shape
    assert jnp.allclose(loss2, ref2, rtol=2e-3, atol=2e-3)
    sum2 = jax.block_until_ready(sigmoid_loss(yp2, yt2, "sum"))
    assert jnp.allclose(sum2, jnp.sum(ref2), rtol=2e-3)

    # bf16 inputs: in-kernel casts + byte-scaled block_rows.
    yp3 = jax.random.normal(k1, (4, 4096), dtype=jnp.bfloat16)
    yt3 = jnp.sign(jax.random.normal(k2, (4, 4096))).astype(jnp.bfloat16)
    ref3 = 1.0 / (1.0 + jnp.exp(jnp.ravel(yt3).astype(jnp.float32)
                                * jnp.ravel(yp3).astype(jnp.float32)))
    loss3 = jax.block_until_ready(sigmoid_loss(yp3, yt3, "none"))
    assert loss3.dtype == jnp.bfloat16
    assert jnp.allclose(loss3.astype(jnp.float32), ref3, rtol=2e-2, atol=2e-2)
    mean3 = jax.block_until_ready(sigmoid_loss(yp3, yt3, "mean"))
    assert jnp.allclose(mean3.astype(jnp.float32), jnp.mean(ref3),
                        rtol=2e-2, atol=2e-2)

    print("KERNEL_OK")
</pallas_src>

<mosaic_0001>
module attributes {stable_mosaic.version = 11 : i64} {
  func.func @_elementwise_kernel(%arg0: i32, %arg1: memref<32x256xf32, #tpu.memory_space<vmem>>, %arg2: memref<32x256xf32, #tpu.memory_space<vmem>>, %arg3: memref<32x256xf32, #tpu.memory_space<vmem>>) attributes {dimension_semantics = [#tpu.dimension_semantics<parallel>], iteration_bounds = array<i64: 1>, scalar_prefetch = 0 : i64, scratch_operands = 0 : i64, tpu.core_type = #tpu.core_type<tc>, window_params = [{transform_indices = @transform_0, window_bounds = array<i64: 32, 256>}, {transform_indices = @transform_1, window_bounds = array<i64: 32, 256>}, {transform_indices = @transform_2, window_bounds = array<i64: 32, 256>}]} {
    %c0 = arith.constant 0 : index
    %c0_0 = arith.constant 0 : index
    %0 = vector.load %arg1[%c0, %c0_0] : memref<32x256xf32, #tpu.memory_space<vmem>>, vector<32x256xf32>
    %c0_1 = arith.constant 0 : index
    %c0_2 = arith.constant 0 : index
    %1 = vector.load %arg2[%c0_1, %c0_2] : memref<32x256xf32, #tpu.memory_space<vmem>>, vector<32x256xf32>
    %2 = arith.mulf %1, %0 : vector<32x256xf32>
    %cst = arith.constant 5.000000e-01 : f32
    %3 = vector.broadcast %cst : f32 to vector<32x256xf32>
    %4 = arith.mulf %3, %2 : vector<32x256xf32>
    %5 = math.tanh %4 : vector<32x256xf32>
    %cst_3 = arith.constant 5.000000e-01 : f32
    %6 = vector.broadcast %cst_3 : f32 to vector<32x256xf32>
    %7 = arith.mulf %6, %5 : vector<32x256xf32>
    %cst_4 = arith.constant 5.000000e-01 : f32
    %8 = vector.broadcast %cst_4 : f32 to vector<32x256xf32>
    %9 = arith.subf %8, %7 : vector<32x256xf32>
    %c0_5 = arith.constant 0 : index
    %c0_6 = arith.constant 0 : index
    %10 = vector.load %arg3[%c0_5, %c0_6] : memref<32x256xf32, #tpu.memory_space<vmem>>, vector<32x256xf32>
    tpu.vector_store %arg3[%c0_5, %c0_6], %9 {strides = array<i32>} : memref<32x256xf32, #tpu.memory_space<vmem>>, vector<32x256xf32>,
    return
  }
  func.func @transform_0(%arg0: i32) -> (i32, i32) {
    %c0_i32 = arith.constant 0 : i32
    %c0_i32_0 = arith.constant 0 : i32
    return %arg0, %c0_i32 : i32, i32
  }
  func.func @transform_1(%arg0: i32) -> (i32, i32) {
    %c0_i32 = arith.constant 0 : i32
    %c0_i32_0 = arith.constant 0 : i32
    return %arg0, %c0_i32 : i32, i32
  }
  func.func @transform_2(%arg0: i32) -> (i32, i32) {
    %c0_i32 = arith.constant 0 : i32
    %c0_i32_0 = arith.constant 0 : i32
    return %arg0, %c0_i32 : i32, i32
  }
}

</mosaic_0001>

<llo_original>
// kernel: tpu_custom_call.1
$region0: #{tpu_custom_call.1}
  #allocation0 [shape = 'u32[]', space=smem, size = 0x4, offset = 0x4, fixed_abs, tag = 'smem constant byte address 0x4 - core index']
  #allocation1 [shape = 'u32[144,128]{1,0:T(1,128)}', space=vmem, size = 0x12000, scoped, tag = 'internal scratch']
  %s0 = inlined_call_operand.hbm [shape: f32[32,256], index: 0, kind: input, shape index: {}]
  %s1 = inlined_call_operand.hbm [shape: f32[32,256], index: 1, kind: input, shape index: {}]
  %s2 = inlined_call_operand.hbm [shape: f32[32,256], index: 2, kind: output, shape index: {}]
  %s3 = sld [smem:[#allocation0]]
  $region26: #{tpu_custom_call.1} parent=0
    _
  %s5 = ssub.s32 1, %s3
  %s6 = scalar_select 0, %s5, %s3
  $region1: #{tpu_custom_call.1} parent=0
    #allocation2 [shape = 'u8[32768]{0}', space=vmem, size = 0x8000, scoped, tag = 'input window, operand 0, single buffered']
    #allocation3 [shape = 's32[1]{0}', space=sflag, size = 0x4, scoped, tag = 'scoped memory for tpu_custom_call.1']
    #allocation4 [shape = 's32[1]{0}', space=sflag, size = 0x4, scoped, tag = 'scoped memory for tpu_custom_call.1']
    #allocation5 [shape = 'u8[32768]{0}', space=vmem, size = 0x8000, scoped, tag = 'input window, operand 1, single buffered']
    #allocation6 [shape = 's32[1]{0}', space=sflag, size = 0x4, scoped, tag = 'scoped memory for tpu_custom_call.1']
    #allocation7 [shape = 'u8[32768]{0}', space=vmem, size = 0x8000, scoped, tag = 'output window, operand 0, single buffered']
    %7 = vsyncpa [#allocation3], 0
    %8 = vsyncpa [#allocation6], 0
    %9 = vsyncpa [#allocation4], 0
    // Predicated region
    $region2: #{tpu_custom_call.1} parent=1 // pred_check
      _
    $region3: #{tpu_custom_call.1} parent=1 // pred_check_branch
      %11 = sbr.rel (0) target = $region5
    $region4: #{tpu_custom_call.1} parent=1 // pred_region
      %s13 = ssub.s32 1024, 1024
      %14 = vsyncadd [#allocation3], %s13
      %s15 = sshll.u32 [#allocation2], 4
      %s16 = int_to_ptr.vmem [resolvable:$true] %s15
      %21 = dma.hbm_to_vmem [thread:$0]  %s0, 1024, %s16, [#allocation3], 256, 256, 16
    $region5: #{tpu_custom_call.1} parent=1 // pred_fallthru
      _
    // Predicated region
    $region6: #{tpu_custom_call.1} parent=1 // pred_check
      _
    $region7: #{tpu_custom_call.1} parent=1 // pred_check_branch
      %23 = sbr.rel (0) target = $region9
    $region8: #{tpu_custom_call.1} parent=1 // pred_region
      %s25 = ssub.s32 1024, 1024
      %26 = vsyncadd [#allocation6], %s25
      %s27 = sshll.u32 [#allocation5], 4
      %s28 = int_to_ptr.vmem [resolvable:$true] %s27
      %33 = dma.hbm_to_vmem [thread:$0]  %s1, 1024, %s28, [#allocation6], 256, 256, 16
    $region9: #{tpu_custom_call.1} parent=1 // pred_fallthru
      _
    // Predicated region
    $region10: #{tpu_custom_call.1} parent=1 // pred_check
      _
    $region11: #{tpu_custom_call.1} parent=1 // pred_check_branch
      %35 = sbr.rel (0) target = $region13
    $region12: #{tpu_custom_call.1} parent=1 // pred_region
      %36 = dma.done [#allocation3], 1024
    $region13: #{tpu_custom_call.1} parent=1 // pred_fallthru
      _
    // Predicated region
    $region14: #{tpu_custom_call.1} parent=1 // pred_check
      _
    $region15: #{tpu_custom_call.1} parent=1 // pred_check_branch
      %38 = sbr.rel (0) target = $region17
    $region16: #{tpu_custom_call.1} parent=1 // pred_region
      %39 = dma.done [#allocation6], 1024
    $region17: #{tpu_custom_call.1} parent=1 // pred_fallthru
      _
    %v40 = vld [vmem:[#allocation2] sm:$0xff]
    %v41 = vld [vmem:[#allocation2 + $0x8] sm:$0xff]
    %v42 = vld [vmem:[#allocation2 + $0x10] sm:$0xff]
    %v43 = vld [vmem:[#allocation2 + $0x18] sm:$0xff]
    %v44 = vld [vmem:[#allocation2 + $0x20] sm:$0xff]
    %v45 = vld [vmem:[#allocation2 + $0x28] sm:$0xff]
    %v46 = vld [vmem:[#allocation2 + $0x30] sm:$0xff]
    %v47 = vld [vmem:[#allocation2 + $0x38] sm:$0xff]
    %v48 = vld [vmem:[#allocation5] sm:$0xff]
    %v49 = vld [vmem:[#allocation5 + $0x8] sm:$0xff]
    %v50 = vld [vmem:[#allocation5 + $0x10] sm:$0xff]
    %v51 = vld [vmem:[#allocation5 + $0x18] sm:$0xff]
    %v52 = vld [vmem:[#allocation5 + $0x20] sm:$0xff]
    %v53 = vld [vmem:[#allocation5 + $0x28] sm:$0xff]
    %v54 = vld [vmem:[#allocation5 + $0x30] sm:$0xff]
    %v55 = vld [vmem:[#allocation5 + $0x38] sm:$0xff]
    %v56 = vmul.f32 %v48, %v40
    %v57 = vmul.f32 %v49, %v41
    %v58 = vmul.f32 %v50, %v42
    %v59 = vmul.f32 %v51, %v43
    %v60 = vmul.f32 %v52, %v44
    %v61 = vmul.f32 %v53, %v45
    %v62 = vmul.f32 %v54, %v46
    %v63 = vmul.f32 %v55, %v47
    %v64 = vmul.f32 %v56, 0.5
    %v65 = vmul.f32 %v57, 0.5
    %v66 = vmul.f32 %v58, 0.5
    %v67 = vmul.f32 %v59, 0.5
    %v68 = vmul.f32 %v60, 0.5
    %v69 = vmul.f32 %v61, 0.5
    %v70 = vmul.f32 %v62, 0.5
    %v71 = vmul.f32 %v63, 0.5
    %v72 = vtanh.pop %v64
    %v73 = vtanh.pop %v65
    %v74 = vtanh.pop %v66
    %v75 = vtanh.pop %v67
    %v76 = vtanh.pop %v68
    %v77 = vtanh.pop %v69
    %v78 = vtanh.pop %v70
    %v79 = vtanh.pop %v71
    %v80 = vmul.f32 %v72, 0.5
    %v81 = vmul.f32 %v73, 0.5
    %v82 = vmul.f32 %v74, 0.5
    %v83 = vmul.f32 %v75, 0.5
    %v84 = vmul.f32 %v76, 0.5
    %v85 = vmul.f32 %v77, 0.5
    %v86 = vmul.f32 %v78, 0.5
    %v87 = vmul.f32 %v79, 0.5
    %v88 = vsub.f32 0.5, %v80
    %v89 = vsub.f32 0.5, %v81
    %v90 = vsub.f32 0.5, %v82
    %v91 = vsub.f32 0.5, %v83
    %v92 = vsub.f32 0.5, %v84
    %v93 = vsub.f32 0.5, %v85
    %v94 = vsub.f32 0.5, %v86
    %v95 = vsub.f32 0.5, %v87
    %96 = vst [vmem:[#allocation7] sm:$0xff] %v88
    %97 = vst [vmem:[#allocation7 + $0x8] sm:$0xff] %v89
    %98 = vst [vmem:[#allocation7 + $0x10] sm:$0xff] %v90
    %99 = vst [vmem:[#allocation7 + $0x18] sm:$0xff] %v91
    %100 = vst [vmem:[#allocation7 + $0x20] sm:$0xff] %v92
    %101 = vst [vmem:[#allocation7 + $0x28] sm:$0xff] %v93
    %102 = vst [vmem:[#allocation7 + $0x30] sm:$0xff] %v94
    %103 = vst [vmem:[#allocation7 + $0x38] sm:$0xff] %v95
    // Predicated region
    $region18: #{tpu_custom_call.1} parent=1 // pred_check
      _
    $region19: #{tpu_custom_call.1} parent=1 // pred_check_branch
      %105 = sbr.rel (0) target = $region21
    $region20: #{tpu_custom_call.1} parent=1 // pred_region
      %s107 = ssub.s32 1024, 1024
      %108 = vsyncadd [#allocation4], %s107
      %s109 = sshll.u32 [#allocation7], 4
      %s110 = int_to_ptr.vmem [resolvable:$true] %s109
      %115 = dma.vmem_to_hbm [thread:$0]  %s110, 1024, %s2, [#allocation4], 256, 256, 16
    $region21: #{tpu_custom_call.1} parent=1 // pred_fallthru
      _
    // Predicated region
    $region22: #{tpu_custom_call.1} parent=1 // pred_check
      _
    $region23: #{tpu_custom_call.1} parent=1 // pred_check_branch
      %117 = sbr.rel (0) target = $region25
    $region24: #{tpu_custom_call.1} parent=1 // pred_region
      %118 = dma.done [#allocation4], 1024
    $region25: #{tpu_custom_call.1} parent=1 // pred_fallthru
      _
    %119 = vsyncpa [#allocation3], 1
    %120 = vsyncpa [#allocation6], 1
    %121 = vsyncpa [#allocation4], 1

</llo_original>
